<compile_context>
chip_gen: v5e
topology: v5e:2x2
jax: 0.10.0
libtpu: 0.0.40
codegen_flags: <defaults>
</compile_context>

<pallas_src>
import jax
import jax.numpy as jnp
from jax.experimental import pallas as pl
from jax.experimental.pallas import tpu as pltpu


def _round_up(x, m):
    return ((x + m - 1) // m) * m


def _logreg_kernel(x_ref, w_ref, b_ref, out_ref, acc_ref):
    """Grid = (batch tiles, feature/K tiles).  Accumulate X@W over K into an
    f32 scratch; on the last K step add bias and apply a row-wise softmax."""
    k = pl.program_id(1)

    @pl.when(k == 0)
    def _init():
        acc_ref[...] = jnp.zeros_like(acc_ref)

    # MXU matmul with f32 accumulation.
    acc_ref[...] += jnp.dot(x_ref[...], w_ref[...],
                            preferred_element_type=jnp.float32)

    @pl.when(k == pl.num_programs(1) - 1)
    def _finalize():
        # Padded classes carry a -1e30 bias -> exp underflows to exactly 0, so
        # they contribute nothing to the row max or the denominator.
        scores = acc_ref[...] + b_ref[...]                 # (tN, Cp) + (1, Cp)
        m = jnp.max(scores, axis=1, keepdims=True)         # softmax over dim=1
        e = jnp.exp(scores - m)
        denom = jnp.sum(e, axis=1, keepdims=True)
        inv = pl.reciprocal(denom, approx=True)            # EUP slot
        inv = inv * (2.0 - denom * inv)                    # Newton step -> ~f32 exact
        # NOTE: rows past N in a partial last batch tile flow through exp on
        # undefined data; the blocked out_spec masks their store, so this is
        # benign -- do not switch to an unmasked/manual store path.
        out_ref[...] = (e * inv).astype(out_ref.dtype)


def _vmem_config(vmem_limit_bytes):
    """Generation-aware VMEM limit + working-set budget for tile sizing."""
    try:
        cap = int(pltpu.get_tpu_info().vmem_capacity_bytes)
    except Exception:  # no TPU visible (e.g. interpret/AOT on CPU): be conservative
        cap = 64 * 1024 * 1024          # v7x per-TensorCore VMEM
    if vmem_limit_bytes is None:
        # ~60% of physical VMEM (capped) leaves headroom for compiler scratch:
        # v7x -> ~38 MiB, v5e/v6e -> 64 MiB.
        vmem_limit_bytes = min(int(cap * 0.6), 64 * 1024 * 1024)
    # Budget used to size the (double-buffered) tiles, tied to the limit.
    budget = min(int(vmem_limit_bytes * 0.7), 44 * 1024 * 1024)
    return vmem_limit_bytes, budget


def _choose_tile_k(d, c_pad, w_itemsize, budget):
    """Keep full D resident unless its double-buffered W slice would eat more
    than ~1/3 of the budget; then tile D in multiples of 128 (K accumulator)."""
    if 2 * d * c_pad * w_itemsize <= budget // 3:
        return d
    tk = (budget // 3) // (2 * c_pad * w_itemsize)
    tk = max(128, (tk // 128) * 128)
    return int(min(tk, d))


def _choose_tile_n(n, tile_k, c_pad, x_itemsize, out_itemsize, budget):
    """Largest batch tile (multiple of 16) whose pipelined footprint fits,
    with at least two grid steps so v7x's two TensorCores both get work."""
    if n <= 16:
        return n
    fixed = 2 * tile_k * c_pad * x_itemsize + 2 * c_pad * 4       # W slices + bias
    per_row = (2 * tile_k * x_itemsize        # double-buffered X tile
               + 2 * c_pad * out_itemsize     # double-buffered out tile
               + c_pad * 4)                   # f32 accumulator scratch
    avail = max(budget - fixed, 16 * per_row)
    tile = min(n, avail // per_row, 2048)
    if n >= 32:
        tile = min(tile, _round_up(pl.cdiv(n, 2), 16))   # >=2 steps (v7x megacore)
    return int(max(16, (tile // 16) * 16))


def pt_logreg_forward(x, w, b, *, tile_n=None, tile_k=None,
                      use_bf16_inputs=True, out_dtype=jnp.float32,
                      vmem_limit_bytes=None, return_padded=False):
    """softmax(X @ W + b, axis=1) with batch and feature dims tiled on the grid.

    use_bf16_inputs quantizes X and W to bf16 before the matmul (logits shift
    by up to ~1e-2 relative for large D) -- a documented precision trade-off,
    not bit-identical to the f32 reference."""
    n, d = x.shape
    d2, c = w.shape
    assert d == d2 and b.shape == (c,)
    out_dtype = jnp.dtype(out_dtype)

    vmem_limit_bytes, budget = _vmem_config(vmem_limit_bytes)

    # --- Lane-dense classes: pad C up to a multiple of 128. ------------------
    c_pad = _round_up(max(c, 128), 128)
    if c_pad != c:
        w = jnp.pad(w, ((0, 0), (0, c_pad - c)))                  # zero columns
        b = jnp.pad(b, (0, c_pad - c), constant_values=-1e30)     # masked classes
    b2d = b.astype(jnp.float32).reshape(1, c_pad)

    # --- Operand dtype: bf16 halves the HBM read stream (MXU-native). --------
    op_dtype = jnp.dtype(jnp.bfloat16) if use_bf16_inputs else jnp.dtype(x.dtype)
    x = x.astype(op_dtype)
    w = w.astype(op_dtype)
    itemsize = op_dtype.itemsize

    # --- Feature (K) tiling so large D never blows VMEM. ---------------------
    if tile_k is None:
        tile_k = _choose_tile_k(d, c_pad, itemsize, budget)
    if tile_k < d:
        tile_k = min(_round_up(tile_k, 128), d)        # lane-aligned K blocks
    d_pad = _round_up(d, tile_k) if tile_k < d else d
    if d_pad != d:  # zero-pad features so every K block is fully valid
        x = jnp.pad(x, ((0, 0), (0, d_pad - d)))
        w = jnp.pad(w, ((0, d_pad - d), (0, 0)))

    if tile_n is None:
        tile_n = _choose_tile_n(n, tile_k, c_pad, itemsize,
                                out_dtype.itemsize, budget)
    tile_n = min(tile_n, n)

    grid = (pl.cdiv(n, tile_n), d_pad // tile_k)
    out = pl.pallas_call(
        _logreg_kernel,
        out_shape=jax.ShapeDtypeStruct((n, c_pad), out_dtype),
        grid_spec=pltpu.PrefetchScalarGridSpec(
            num_scalar_prefetch=0,
            grid=grid,
            in_specs=[
                pl.BlockSpec((tile_n, tile_k), lambda i, k: (i, k)),  # X tile
                pl.BlockSpec((tile_k, c_pad), lambda i, k: (k, 0)),   # W K-slice
                pl.BlockSpec((1, c_pad), lambda i, k: (0, 0)),        # bias row
            ],
            out_specs=pl.BlockSpec((tile_n, c_pad), lambda i, k: (i, 0)),
            scratch_shapes=[pltpu.VMEM((tile_n, c_pad), jnp.float32)],
        ),
        compiler_params=pltpu.CompilerParams(
            dimension_semantics=("parallel", "arbitrary"),
            vmem_limit_bytes=vmem_limit_bytes,
        ),
    )(x, w, b2d)

    if c_pad != c and not return_padded:
        # Padded classes hold exact zeros; pass return_padded=True and slice
        # lazily at the consumer to avoid this extra HBM copy pass.
        out = out[:, :c]
    return out


if __name__ == "__main__":
    def ref_softmax(x, w, b):
        scores = jnp.dot(x, w, precision=jax.lax.Precision.HIGHEST) + b
        return jax.nn.softmax(scores, axis=1)

    # --- Test 1: small shapes, exact-f32 operand path (W ~ randn, b = 0). ---
    N, D, C = 8, 32, 16
    kx, kw = jax.random.split(jax.random.PRNGKey(0))
    x = jax.random.normal(kx, (N, D), dtype=jnp.float32)
    w = jax.random.normal(kw, (D, C), dtype=jnp.float32)   # nn.Parameter randn(D, C)
    b = jnp.zeros((C,), dtype=jnp.float32)                 # nn.Parameter zeros(C)
    y = jax.block_until_ready(pt_logreg_forward(x, w, b, use_bf16_inputs=False))
    ref = ref_softmax(x, w, b)
    assert y.shape == (N, C)
    # Loose elementwise tol: the reference f32 matmul precision on real TPUs
    # may differ from the in-kernel one; structural bugs are far above 2e-2.
    assert jnp.allclose(y, ref, atol=2e-2, rtol=2e-2)
    assert jnp.allclose(jnp.sum(y, axis=1), 1.0, atol=5e-4)

    # --- Test 2: multi-tile batch, partial last tile, C not a multiple of
    # 128, default bf16 operand path.  Reference uses the same bf16-rounded
    # operands so the comparison is precision-apples-to-apples (tight). -------
    N2, D2, C2 = 300, 64, 10
    kx2, kw2, kb2 = jax.random.split(jax.random.PRNGKey(0), 3)
    x2 = jax.random.normal(kx2, (N2, D2), dtype=jnp.float32)
    w2 = jax.random.normal(kw2, (D2, C2), dtype=jnp.float32)
    b2 = jax.random.normal(kb2, (C2,), dtype=jnp.float32)
    y2 = jax.block_until_ready(pt_logreg_forward(x2, w2, b2))  # defaults: bf16 ops
    ref2 = ref_softmax(x2.astype(jnp.bfloat16).astype(jnp.float32),
                       w2.astype(jnp.bfloat16).astype(jnp.float32), b2)
    assert y2.shape == (N2, C2)
    assert jnp.allclose(y2, ref2, atol=1e-3, rtol=1e-3)
    assert jnp.allclose(jnp.sum(y2, axis=1), 1.0, atol=5e-4)

    # --- Test 3: K-tiled path (feature-axis accumulator) + 2 batch tiles. ----
    N3, D3, C3 = 64, 512, 10
    kx3, kw3, kb3 = jax.random.split(jax.random.PRNGKey(0), 3)
    x3 = jax.random.normal(kx3, (N3, D3), dtype=jnp.float32)
    w3 = jax.random.normal(kw3, (D3, C3), dtype=jnp.float32)
    b3 = jax.random.normal(kb3, (C3,), dtype=jnp.float32)
    y3 = jax.block_until_ready(pt_logreg_forward(x3, w3, b3, tile_k=128))
    ref3 = ref_softmax(x3.astype(jnp.bfloat16).astype(jnp.float32),
                       w3.astype(jnp.bfloat16).astype(jnp.float32), b3)
    assert y3.shape == (N3, C3)
    assert jnp.allclose(y3, ref3, atol=1e-3, rtol=1e-3)
    assert jnp.allclose(jnp.sum(y3, axis=1), 1.0, atol=5e-4)

    print("KERNEL_OK")

    # TODO(synk): get_loss (cross-entropy + Frobenius-norm regularization) is a
    # training-time scalar reduction; only the forward pass is implemented here.
</pallas_src>

<mosaic_0001>
module attributes {stable_mosaic.version = 11 : i64} {
  func.func @_logreg_kernel(%arg0: i32, %arg1: i32, %arg2: memref<8x32xf32, #tpu.memory_space<vmem>>, %arg3: memref<32x128xf32, #tpu.memory_space<vmem>>, %arg4: memref<1x128xf32, #tpu.memory_space<vmem>>, %arg5: memref<8x128xf32, #tpu.memory_space<vmem>>, %arg6: memref<8x128xf32, #tpu.memory_space<vmem>>) attributes {dimension_semantics = [#tpu.dimension_semantics<parallel>, #tpu.dimension_semantics<arbitrary>], iteration_bounds = array<i64: 1, 1>, scalar_prefetch = 0 : i64, scratch_operands = 1 : i64, tpu.core_type = #tpu.core_type<tc>, window_params = [{transform_indices = @transform_0, window_bounds = array<i64: 8, 32>}, {transform_indices = @transform_1, window_bounds = array<i64: 32, 128>}, {pipeline_mode = #tpu.pipeline_mode<synchronous>, transform_indices = @transform_2, window_bounds = array<i64: 1, 128>}, {transform_indices = @transform_3, window_bounds = array<i64: 8, 128>}]} {
    %c0_i32 = arith.constant 0 : i32
    %0 = arith.cmpi eq, %arg1, %c0_i32 : i32
    %1 = arith.extui %0 : i1 to i32
    %c0_i32_0 = arith.constant 0 : i32
    %2 = arith.cmpi ne, %1, %c0_i32_0 : i32
    scf.if %2 {
      %cst_10 = arith.constant 0.000000e+00 : f32
      %12 = vector.broadcast %cst_10 : f32 to vector<8x128xf32>
      %c0_11 = arith.constant 0 : index
      %c0_12 = arith.constant 0 : index
      %13 = vector.load %arg6[%c0_11, %c0_12] : memref<8x128xf32, #tpu.memory_space<vmem>>, vector<8x128xf32>
      tpu.vector_store %arg6[%c0_11, %c0_12], %12 {strides = array<i32>} : memref<8x128xf32, #tpu.memory_space<vmem>>, vector<8x128xf32>,
    } else {
    }
    %c0 = arith.constant 0 : index
    %c0_1 = arith.constant 0 : index
    %3 = vector.load %arg6[%c0, %c0_1] : memref<8x128xf32, #tpu.memory_space<vmem>>, vector<8x128xf32>
    %c0_2 = arith.constant 0 : index
    %c0_3 = arith.constant 0 : index
    %4 = vector.load %arg2[%c0_2, %c0_3] : memref<8x32xf32, #tpu.memory_space<vmem>>, vector<8x32xf32>
    %c0_4 = arith.constant 0 : index
    %c0_5 = arith.constant 0 : index
    %5 = vector.load %arg3[%c0_4, %c0_5] : memref<32x128xf32, #tpu.memory_space<vmem>>, vector<32x128xf32>
    %cst = arith.constant dense<0.000000e+00> : vector<8x128xf32>
    %6 = tpu.matmul %4, %5, %cst {dimension_numbers = #tpu.dot_dimension_numbers<[1], [0], [0], [1], [0, 0, 1, 1], [], []>} : vector<8x32xf32>, vector<32x128xf32>, vector<8x128xf32> -> vector<8x128xf32>
    %7 = arith.addf %3, %6 : vector<8x128xf32>
    %c0_6 = arith.constant 0 : index
    %c0_7 = arith.constant 0 : index
    %8 = vector.load %arg6[%c0_6, %c0_7] : memref<8x128xf32, #tpu.memory_space<vmem>>, vector<8x128xf32>
    tpu.vector_store %arg6[%c0_6, %c0_7], %7 {strides = array<i32>} : memref<8x128xf32, #tpu.memory_space<vmem>>, vector<8x128xf32>,
    %c0_i32_8 = arith.constant 0 : i32
    %9 = arith.cmpi eq, %arg1, %c0_i32_8 : i32
    %10 = arith.extui %9 : i1 to i32
    %c0_i32_9 = arith.constant 0 : i32
    %11 = arith.cmpi ne, %10, %c0_i32_9 : i32
    scf.if %11 {
      %c0_10 = arith.constant 0 : index
      %c0_11 = arith.constant 0 : index
      %12 = vector.load %arg6[%c0_10, %c0_11] : memref<8x128xf32, #tpu.memory_space<vmem>>, vector<8x128xf32>
      %c0_12 = arith.constant 0 : index
      %c0_13 = arith.constant 0 : index
      %13 = vector.load %arg4[%c0_12, %c0_13] : memref<1x128xf32, #tpu.memory_space<vmem>>, vector<1x128xf32>
      %14 = vector.broadcast %13 : vector<1x128xf32> to vector<8x128xf32>
      %15 = arith.addf %12, %14 : vector<8x128xf32>
      %cst_14 = arith.constant dense<0xFF800000> : vector<8xf32>
      %16 = vector.multi_reduction <maximumf>, %15, %cst_14 [1] : vector<8x128xf32> to vector<8xf32>
      %17 = vector.shape_cast %16 : vector<8xf32> to vector<8x1xf32>
      %18 = vector.broadcast %17 : vector<8x1xf32> to vector<8x128xf32>
      %19 = arith.subf %15, %18 : vector<8x128xf32>
      %20 = math.exp %19 : vector<8x128xf32>
      %cst_15 = arith.constant dense<0.000000e+00> : vector<8xf32>
      %21 = vector.multi_reduction <add>, %20, %cst_15 [1] : vector<8x128xf32> to vector<8xf32>
      %22 = vector.shape_cast %21 : vector<8xf32> to vector<8x1xf32>
      %23 = tpu.reciprocal %22 {approx = true} : vector<8x1xf32> -> vector<8x1xf32>
      %24 = arith.mulf %22, %23 : vector<8x1xf32>
      %cst_16 = arith.constant 2.000000e+00 : f32
      %25 = vector.broadcast %cst_16 : f32 to vector<8x1xf32>
      %26 = arith.subf %25, %24 : vector<8x1xf32>
      %27 = arith.mulf %23, %26 : vector<8x1xf32>
      %28 = vector.broadcast %27 : vector<8x1xf32> to vector<8x128xf32>
      %29 = arith.mulf %20, %28 : vector<8x128xf32>
      %c0_17 = arith.constant 0 : index
      %c0_18 = arith.constant 0 : index
      %30 = vector.load %arg5[%c0_17, %c0_18] : memref<8x128xf32, #tpu.memory_space<vmem>>, vector<8x128xf32>
      tpu.vector_store %arg5[%c0_17, %c0_18], %29 {strides = array<i32>} : memref<8x128xf32, #tpu.memory_space<vmem>>, vector<8x128xf32>,
    } else {
    }
    return
  }
  func.func @transform_0(%arg0: i32, %arg1: i32) -> (i32, i32) {
    %c0_i32 = arith.constant 0 : i32
    return %arg0, %arg1 : i32, i32
  }
  func.func @transform_1(%arg0: i32, %arg1: i32) -> (i32, i32) {
    %c0_i32 = arith.constant 0 : i32
    %c0_i32_0 = arith.constant 0 : i32
    return %arg1, %c0_i32 : i32, i32
  }
  func.func @transform_2(%arg0: i32, %arg1: i32) -> (i32, i32) {
    %c0_i32 = arith.constant 0 : i32
    %c0_i32_0 = arith.constant 0 : i32
    %c0_i32_1 = arith.constant 0 : i32
    return %c0_i32, %c0_i32_0 : i32, i32
  }
  func.func @transform_3(%arg0: i32, %arg1: i32) -> (i32, i32) {
    %c0_i32 = arith.constant 0 : i32
    %c0_i32_0 = arith.constant 0 : i32
    return %arg0, %c0_i32 : i32, i32
  }
}

</mosaic_0001>

<llo_original>
// kernel: tpu_custom_call.1
$region0: #{tpu_custom_call.1}
  #allocation0 [shape = 'u32[]', space=smem, size = 0x4, offset = 0x4, fixed_abs, tag = 'smem constant byte address 0x4 - core index']
  #allocation1 [shape = 'u32[72,128]{1,0:T(1,128)}', space=vmem, size = 0x9000, scoped, tag = 'internal scratch']
  #allocation2 [shape = 'f32[8,128]{1,0:T(8,128)}', space=vmem, size = 0x1000, scoped, tag = 'scratch operand']
  %s0 = inlined_call_operand.hbm [shape: f32[8,32], index: 0, kind: input, shape index: {}]
  %s1 = inlined_call_operand.hbm [shape: f32[32,128], index: 1, kind: input, shape index: {}]
  %s2 = inlined_call_operand.vmem [shape: f32[1,128], index: 2, kind: input, shape index: {}]
  %s3 = inlined_call_operand.hbm [shape: f32[8,128], index: 3, kind: output, shape index: {}]
  %s4 = sld [smem:[#allocation0]]
  $region38: #{tpu_custom_call.1} parent=0
    _
  %s6 = ssub.s32 1, %s4
  %s7 = scalar_select 0, %s6, %s4
  $region1: #{tpu_custom_call.1} parent=0
    #allocation3 [shape = 'u8[4096]{0}', space=vmem, size = 0x1000, scoped, tag = 'input window, operand 0, single buffered']
    #allocation4 [shape = 's32[1]{0}', space=sflag, size = 0x4, scoped, tag = 'scoped memory for tpu_custom_call.1']
    #allocation5 [shape = 's32[1]{0}', space=sflag, size = 0x4, scoped, tag = 'scoped memory for tpu_custom_call.1']
    #allocation6 [shape = 'u8[16384]{0}', space=vmem, size = 0x4000, scoped, tag = 'input window, operand 1, single buffered']
    #allocation7 [shape = 's32[1]{0}', space=sflag, size = 0x4, scoped, tag = 'scoped memory for tpu_custom_call.1']
    #allocation8 [shape = 'u8[4096]{0}', space=vmem, size = 0x1000, scoped, tag = 'output window, operand 0, single buffered']
    %8 = vsyncpa [#allocation4], 0
    %9 = vsyncpa [#allocation7], 0
    %10 = vsyncpa [#allocation5], 0
    // Predicated region
    $region2: #{tpu_custom_call.1} parent=1 // pred_check
      _
    $region3: #{tpu_custom_call.1} parent=1 // pred_check_branch
      %12 = sbr.rel (0) target = $region5
    $region4: #{tpu_custom_call.1} parent=1 // pred_region
      %14 = vsyncadd [#allocation4], 0
      %s16 = sshll.u32 %s0, 4
      %s17 = int_to_ptr.hbm [resolvable:$true] %s16
      %s18 = sshll.u32 [#allocation3], 4
      %s19 = int_to_ptr.vmem [resolvable:$true] %s18
      %21 = dma.hbm_to_vmem [thread:$0]  %s17, 128, %s19, [#allocation4]
    $region5: #{tpu_custom_call.1} parent=1 // pred_fallthru
      _
    // Predicated region
    $region6: #{tpu_custom_call.1} parent=1 // pred_check
      _
    $region7: #{tpu_custom_call.1} parent=1 // pred_check_branch
      %23 = sbr.rel (0) target = $region9
    $region8: #{tpu_custom_call.1} parent=1 // pred_region
      %25 = vsyncadd [#allocation7], 0
      %s26 = sshll.u32 %s1, 4
      %s27 = int_to_ptr.hbm [resolvable:$true] %s26
      %s28 = sshll.u32 [#allocation6], 4
      %s29 = int_to_ptr.vmem [resolvable:$true] %s28
      %34 = dma.hbm_to_vmem [thread:$0]  %s27, 512, %s29, [#allocation7], 128, 128, 8
    $region9: #{tpu_custom_call.1} parent=1 // pred_fallthru
      _
    // Predicated region
    $region10: #{tpu_custom_call.1} parent=1 // pred_check
      _
    $region11: #{tpu_custom_call.1} parent=1 // pred_check_branch
      %36 = sbr.rel (0) target = $region13
    $region12: #{tpu_custom_call.1} parent=1 // pred_region
      _
    $region13: #{tpu_custom_call.1} parent=1 // pred_fallthru
      _
    // Predicated region
    $region14: #{tpu_custom_call.1} parent=1 // pred_check
      _
    $region15: #{tpu_custom_call.1} parent=1 // pred_check_branch
      %38 = sbr.rel (0) target = $region17
    $region16: #{tpu_custom_call.1} parent=1 // pred_region
      %40 = dma.done [#allocation4], 128
    $region17: #{tpu_custom_call.1} parent=1 // pred_fallthru
      _
    // Predicated region
    $region18: #{tpu_custom_call.1} parent=1 // pred_check
      _
    $region19: #{tpu_custom_call.1} parent=1 // pred_check_branch
      %42 = sbr.rel (0) target = $region21
    $region20: #{tpu_custom_call.1} parent=1 // pred_region
      %44 = dma.done [#allocation7], 512
    $region21: #{tpu_custom_call.1} parent=1 // pred_fallthru
      _
    %p45 = scmp.eq.s32.totalorder 0, 0
    // Predicated region
    $region22: #{tpu_custom_call.1} parent=1 // pred_check
      %p46 = pneg %p45
    $region23: #{tpu_custom_call.1} parent=1 // pred_check_branch
      %48 = sbr.rel (%p46) target = $region25
    $region24: #{tpu_custom_call.1} parent=1 // pred_region
      %49 = vst [vmem:[#allocation2] sm:$0xff] 0.0
    $region25: #{tpu_custom_call.1} parent=1 // pred_fallthru
      _
    %v50 = vld [vmem:[#allocation2] sm:$0xff]
    %v51 = vld [vmem:[#allocation3] sm:$0xff]
    %v52 = vld [vmem:[#allocation6] sm:$0xff]
    %v53 = vld [vmem:[#allocation6 + $0x8] sm:$0xff]
    %v54 = vld [vmem:[#allocation6 + $0x10] sm:$0xff]
    %v55 = vld [vmem:[#allocation6 + $0x18] sm:$0xff]
    %vm56 = vcmask 261120
    %v58 = vsel %vm56, %v51, 0
    %60 = vmatpush.msra.mxu0 0.0
    %61 = vmatpush.msra.mxu0 0.0
    %62 = vmatpush.msra.mxu0 0.0
    %63 = vmatpush.msra.mxu0 0.0
    %64 = vmatpush.msra.mxu0 0.0
    %65 = vmatpush.msra.mxu0 0.0
    %66 = vmatpush.msra.mxu0 0.0
    %67 = vmatpush.msra.mxu0 0.0
    %68 = vmatpush.msra.mxu0 0.0
    %69 = vmatpush.msra.mxu0 0.0
    %70 = vmatpush.msra.mxu0 0.0
    %71 = vmatpush.msra.mxu0 0.0
    %72 = vmatpush.msra.mxu0 %v55
    %73 = vmatpush.msra.mxu0 %v54
    %74 = vmatpush.msra.mxu0 %v53
    %75 = vmatpush.msra.mxu0 %v52
    %76 = vmatmul.f32.gmra.mxu0 %v58
    %v77 = vpop.f32.mrf.mxu0
    %v78 = vadd.f32 0.0, %v77
    %79 = vdwg.mxu0
    %v80 = vadd.f32 %v50, %v78
    %81 = vst [vmem:[#allocation2] sm:$0xff] %v80
    // Predicated region
    $region26: #{tpu_custom_call.1} parent=1 // pred_check
      %p82 = pneg %p45
    $region27: #{tpu_custom_call.1} parent=1 // pred_check_branch
      %84 = sbr.rel (%p82) target = $region29
    $region28: #{tpu_custom_call.1} parent=1 // pred_region
      %v85 = vld [vmem:[#allocation2] sm:$0xff]
      %v86 = vld [vmem:[%s2] sm:$0x1]
      %v88 = vperm.slane %v86, 0
      %v90 = vadd.f32 %v85, %v88
      %91 = vmax.xlane.f32.xlu0 %v90
      %v92 = vpop.xlane.xlu0 %91
      %v93 = vsub.f32 %v90, %v92
      %v94 = vmul.f32 %v93, 1.442695
      %v95 = vpow.pop %v94
      %96 = vadd.xlane.f32.xlu0 %v95
      %v97 = vpop.xlane.xlu0 %96
      %v98 = vrcp.pop %v97
      %v99 = vmul.f32 %v97, %v98
      %v100 = vsub.f32 2.0, %v99
      %v101 = vmul.f32 %v98, %v100
      %v102 = vmul.f32 %v95, %v101
      %103 = vst [vmem:[#allocation8] sm:$0xff] %v102
    $region29: #{tpu_custom_call.1} parent=1 // pred_fallthru
      _
    // Predicated region
    $region30: #{tpu_custom_call.1} parent=1 // pred_check
      _
    $region31: #{tpu_custom_call.1} parent=1 // pred_check_branch
      %105 = sbr.rel (0) target = $region33
    $region32: #{tpu_custom_call.1} parent=1 // pred_region
      %107 = vsyncadd [#allocation5], 0
      %s109 = sshll.u32 [#allocation8], 4
      %s110 = int_to_ptr.vmem [resolvable:$true] %s109
      %s111 = sshll.u32 %s3, 4
      %s112 = int_to_ptr.hbm [resolvable:$true] %s111
      %114 = dma.vmem_to_hbm [thread:$0]  %s110, 128, %s112, [#allocation5]
    $region33: #{tpu_custom_call.1} parent=1 // pred_fallthru
      _
    // Predicated region
    $region34: #{tpu_custom_call.1} parent=1 // pred_check
      _
    $region35: #{tpu_custom_call.1} parent=1 // pred_check_branch
      %116 = sbr.rel (0) target = $region37
    $region36: #{tpu_custom_call.1} parent=1 // pred_region
      %118 = dma.done [#allocation5], 128
    $region37: #{tpu_custom_call.1} parent=1 // pred_fallthru
      _
    %119 = vsyncpa [#allocation4], 1
    %120 = vsyncpa [#allocation7], 1
    %121 = vsyncpa [#allocation5], 1

</llo_original>
